<compile_context>
chip_gen: v5e
topology: v5e:2x2
jax: 0.10.0
libtpu: 0.0.40
codegen_flags: <defaults>
</compile_context>

<pallas_src>
import functools

import jax
import jax.numpy as jnp
from jax import lax
from jax.experimental import pallas as pl
from jax.experimental.pallas import tpu as pltpu


# Contract the last dim of both operands (x[., K] · W[., K] -> [., .]).
_CONTRACT_LAST = (((1,), (1,)), ((), ()))


def _lora_kernel(*refs, has_bias):
    if has_bias:
        (x_ref, w_ref, a_ref, b_ref, bias_ref,
         o_ref, acc_ref, ax_ref) = refs
    else:
        (x_ref, w_ref, a_ref, b_ref,
         o_ref, acc_ref, ax_ref) = refs
        bias_ref = None

    k = pl.program_id(2)

    @pl.when(k == 0)
    def _init():
        if bias_ref is not None:
            # Initialize the accumulator with the broadcast bias: no separate
            # full [tm, tn] bias-add pass in the epilogue.
            acc_ref[...] = jnp.broadcast_to(
                bias_ref[...].astype(jnp.float32), acc_ref.shape)
        else:
            acc_ref[...] = jnp.zeros_like(acc_ref)
        ax_ref[...] = jnp.zeros_like(ax_ref)

    x = x_ref[...]
    # Base path: x[tm, tk] · W[tn, tk] (contract K)  -> [tm, tn]
    acc_ref[...] += lax.dot_general(
        x, w_ref[...], _CONTRACT_LAST, preferred_element_type=jnp.float32)
    # LoRA down-projection: x[tm, tk] · A[r_pad, tk] -> [tm, r_pad]
    ax_ref[...] += lax.dot_general(
        x, a_ref[...], _CONTRACT_LAST, preferred_element_type=jnp.float32)

    @pl.when(k == pl.num_programs(2) - 1)
    def _epilogue():
        # LoRA up-projection runs once per output tile; scaling is already
        # folded into B.  Casting the f32 intermediate to B's dtype only loses
        # accumulation precision when LoRA params are sub-f32 (acceptable).
        lora = lax.dot_general(
            ax_ref[...].astype(b_ref.dtype), b_ref[...], _CONTRACT_LAST,
            preferred_element_type=jnp.float32)
        o_ref[...] = (acc_ref[...] + lora).astype(o_ref.dtype)


def _round_up(v, m):
    return (v + m - 1) // m * m


def _pad2d(a, rows, cols):
    pr, pc = rows - a.shape[0], cols - a.shape[1]
    if pr == 0 and pc == 0:
        return a
    return jnp.pad(a, ((0, pr), (0, pc)))


def lora_linear(x, weight, bias, lora_A, lora_B, lora_alpha, r,
                *, tm_max=256, tk_max=512, tn_max=512):
    """y = x @ W^T + bias + (x @ A^T @ B^T) * (lora_alpha / r).

    x: [..., in_features]; weight: [out, in]; lora_A: [r, in]; lora_B: [out, r].
    """
    assert r > 0, "LoRA rank must be > 0 for this kernel (r==0 is plain linear)"
    scaling = float(lora_alpha) / float(r)
    out_features, in_features = weight.shape

    orig_lead = x.shape[:-1]
    x2d = x.reshape(-1, in_features)
    M, K, N = x2d.shape[0], in_features, out_features

    # Lane/sublane-aligned padded extents (zero padding is exact: padded K
    # columns contribute 0 to the contraction; padded M/N rows are sliced off).
    r_pad = _round_up(r, 128)           # pad LoRA rank to full 128 lanes
    M_pad = _round_up(M, 8)
    K_pad = _round_up(K, 128)
    N_pad = _round_up(N, 128)

    tm = min(tm_max, M_pad)             # multiple of 8
    tk = min(tk_max, K_pad)             # multiple of 128 (256-aligned by default)
    tn = min(tn_max, N_pad)             # multiple of 128 (lane-dense output)
    M_pad = _round_up(M_pad, tm)
    K_pad = _round_up(K_pad, tk)
    N_pad = _round_up(N_pad, tn)

    x_p = _pad2d(x2d, M_pad, K_pad)
    w_p = _pad2d(weight, N_pad, K_pad)             # stays [out, in]: no HBM transpose
    a_p = _pad2d(lora_A, r_pad, K_pad)
    b_p = _pad2d(lora_B, N_pad, r_pad) * scaling   # fold scaling into tiny B

    has_bias = bias is not None
    grid = (M_pad // tm, N_pad // tn, K_pad // tk)

    in_specs = [
        pl.BlockSpec((tm, tk), lambda i, j, k: (i, k)),       # x tile
        pl.BlockSpec((tn, tk), lambda i, j, k: (j, k)),       # W tile [out, in]
        pl.BlockSpec((r_pad, tk), lambda i, j, k: (0, k)),    # A tile
        pl.BlockSpec((tn, r_pad), lambda i, j, k: (j, 0)),    # B tile (scaled)
    ]
    operands = [x_p, w_p, a_p, b_p]
    if has_bias:
        in_specs.append(pl.BlockSpec((1, tn), lambda i, j, k: (0, j)))
        operands.append(_pad2d(bias.reshape(1, N), 1, N_pad))

    itemsize = x.dtype.itemsize
    flops = 2 * M * K * N + 2 * M * K * r + 2 * M * r * N
    bytes_accessed = ((x_p.size + w_p.size + a_p.size + b_p.size) * itemsize
                      + M_pad * N_pad * itemsize)

    out = pl.pallas_call(
        functools.partial(_lora_kernel, has_bias=has_bias),
        out_shape=jax.ShapeDtypeStruct((M_pad, N_pad), x.dtype),
        grid=grid,
        in_specs=in_specs,
        out_specs=pl.BlockSpec((tm, tn), lambda i, j, k: (i, j)),
        scratch_shapes=[
            pltpu.VMEM((tm, tn), jnp.float32),     # f32 output accumulator
            pltpu.VMEM((tm, r_pad), jnp.float32),  # ax = x @ A^T accumulator
        ],
        compiler_params=pltpu.CompilerParams(
            dimension_semantics=("parallel", "parallel", "arbitrary"),
            vmem_limit_bytes=48 * 1024 * 1024),
        cost_estimate=pl.CostEstimate(
            flops=flops, transcendentals=0, bytes_accessed=bytes_accessed),
    )(*operands)

    out = out[:M, :N]
    return out.reshape(*orig_lead, N)


if __name__ == "__main__":
    # Small, deterministic synthetic setup.
    batch, seq = 2, 8
    in_features, out_features, r, lora_alpha = 32, 32, 4, 8

    key = jax.random.PRNGKey(0)
    k_x, k_w, k_b, k_a, k_bmat = jax.random.split(key, 5)

    x = jax.random.normal(k_x, (batch, seq, in_features), dtype=jnp.float32)
    weight = jax.random.normal(k_w, (out_features, in_features), jnp.float32) * 0.1
    bias = jax.random.normal(k_b, (out_features,), jnp.float32) * 0.1
    # kaiming_uniform_-style A; B random (module zero-inits B, which would make
    # the LoRA branch trivially zero — random B exercises the full path).
    bound = 1.0 / (in_features ** 0.5)
    lora_A = jax.random.uniform(k_a, (r, in_features), jnp.float32, -bound, bound)
    lora_B = jax.random.normal(k_bmat, (out_features, r), jnp.float32) * 0.1

    scaling = lora_alpha / r

    # Check 1: bias path.
    y = lora_linear(x, weight, bias, lora_A, lora_B, lora_alpha, r)
    y = jax.block_until_ready(y)
    y_ref = (x @ weight.T + bias) + (x @ lora_A.T @ lora_B.T) * scaling
    assert y.shape == (batch, seq, out_features)
    assert jnp.allclose(y, y_ref, atol=1e-4, rtol=1e-4), "mismatch (bias path)"

    # Check 2: no-bias path.
    y_nb = lora_linear(x, weight, None, lora_A, lora_B, lora_alpha, r)
    y_nb = jax.block_until_ready(y_nb)
    y_nb_ref = (x @ weight.T) + (x @ lora_A.T @ lora_B.T) * scaling
    assert jnp.allclose(y_nb, y_nb_ref, atol=1e-4, rtol=1e-4), "mismatch (no bias)"

    # Check 3: multi-tile grid (forces 2x2x2 grid to exercise K accumulation,
    # init and epilogue across grid steps) — still small shapes.
    in2, out2 = 256, 256
    k_x2, k_w2, k_b2, k_a2, k_bm2 = jax.random.split(jax.random.PRNGKey(1), 5)
    x2 = jax.random.normal(k_x2, (batch, seq, in2), jnp.float32)
    w2 = jax.random.normal(k_w2, (out2, in2), jnp.float32) * 0.05
    b2 = jax.random.normal(k_b2, (out2,), jnp.float32) * 0.1
    a2 = jax.random.uniform(k_a2, (r, in2), jnp.float32, -bound, bound)
    bm2 = jax.random.normal(k_bm2, (out2, r), jnp.float32) * 0.1
    y2 = lora_linear(x2, w2, b2, a2, bm2, lora_alpha, r,
                     tm_max=8, tk_max=128, tn_max=128)
    y2 = jax.block_until_ready(y2)
    y2_ref = (x2 @ w2.T + b2) + (x2 @ a2.T @ bm2.T) * scaling
    assert jnp.allclose(y2, y2_ref, atol=1e-3, rtol=1e-3), "mismatch (tiled path)"

    print("KERNEL_OK")
</pallas_src>

<mosaic_0001>
module attributes {stable_mosaic.version = 11 : i64} {
  func.func @_lora_kernel(%arg0: i32, %arg1: i32, %arg2: i32, %arg3: memref<16x128xf32, #tpu.memory_space<vmem>>, %arg4: memref<128x128xf32, #tpu.memory_space<vmem>>, %arg5: memref<128x128xf32, #tpu.memory_space<vmem>>, %arg6: memref<128x128xf32, #tpu.memory_space<vmem>>, %arg7: memref<1x128xf32, #tpu.memory_space<vmem>>, %arg8: memref<16x128xf32, #tpu.memory_space<vmem>>, %arg9: memref<16x128xf32, #tpu.memory_space<vmem>>, %arg10: memref<16x128xf32, #tpu.memory_space<vmem>>) attributes {dimension_semantics = [#tpu.dimension_semantics<parallel>, #tpu.dimension_semantics<parallel>, #tpu.dimension_semantics<arbitrary>], iteration_bounds = array<i64: 1, 1, 1>, scalar_prefetch = 0 : i64, scratch_operands = 2 : i64, tpu.core_type = #tpu.core_type<tc>, window_params = [{transform_indices = @transform_0, window_bounds = array<i64: 16, 128>}, {transform_indices = @transform_1, window_bounds = array<i64: 128, 128>}, {transform_indices = @transform_2, window_bounds = array<i64: 128, 128>}, {transform_indices = @transform_3, window_bounds = array<i64: 128, 128>}, {transform_indices = @transform_4, window_bounds = array<i64: 1, 128>}, {transform_indices = @transform_5, window_bounds = array<i64: 16, 128>}]} {
    %c0_i32 = arith.constant 0 : i32
    %0 = arith.cmpi eq, %arg2, %c0_i32 : i32
    %1 = arith.extui %0 : i1 to i32
    %c0_i32_0 = arith.constant 0 : i32
    %2 = arith.cmpi ne, %1, %c0_i32_0 : i32
    scf.if %2 {
      %c0_17 = arith.constant 0 : index
      %c0_18 = arith.constant 0 : index
      %17 = vector.load %arg7[%c0_17, %c0_18] : memref<1x128xf32, #tpu.memory_space<vmem>>, vector<1x128xf32>
      %18 = vector.shape_cast %17 : vector<1x128xf32> to vector<1x128xf32>
      %19 = vector.broadcast %18 : vector<1x128xf32> to vector<16x128xf32>
      %c0_19 = arith.constant 0 : index
      %c0_20 = arith.constant 0 : index
      %20 = vector.load %arg9[%c0_19, %c0_20] : memref<16x128xf32, #tpu.memory_space<vmem>>, vector<16x128xf32>
      tpu.vector_store %arg9[%c0_19, %c0_20], %19 {strides = array<i32>} : memref<16x128xf32, #tpu.memory_space<vmem>>, vector<16x128xf32>,
      %cst_21 = arith.constant 0.000000e+00 : f32
      %21 = vector.broadcast %cst_21 : f32 to vector<16x128xf32>
      %c0_22 = arith.constant 0 : index
      %c0_23 = arith.constant 0 : index
      %22 = vector.load %arg10[%c0_22, %c0_23] : memref<16x128xf32, #tpu.memory_space<vmem>>, vector<16x128xf32>
      tpu.vector_store %arg10[%c0_22, %c0_23], %21 {strides = array<i32>} : memref<16x128xf32, #tpu.memory_space<vmem>>, vector<16x128xf32>,
    } else {
    }
    %c0 = arith.constant 0 : index
    %c0_1 = arith.constant 0 : index
    %3 = vector.load %arg3[%c0, %c0_1] : memref<16x128xf32, #tpu.memory_space<vmem>>, vector<16x128xf32>
    %c0_2 = arith.constant 0 : index
    %c0_3 = arith.constant 0 : index
    %4 = vector.load %arg9[%c0_2, %c0_3] : memref<16x128xf32, #tpu.memory_space<vmem>>, vector<16x128xf32>
    %c0_4 = arith.constant 0 : index
    %c0_5 = arith.constant 0 : index
    %5 = vector.load %arg4[%c0_4, %c0_5] : memref<128x128xf32, #tpu.memory_space<vmem>>, vector<128x128xf32>
    %cst = arith.constant dense<0.000000e+00> : vector<16x128xf32>
    %6 = tpu.matmul %3, %5, %cst {dimension_numbers = #tpu.dot_dimension_numbers<[1], [1], [0], [0], [0, 0, 1, 0], [], []>} : vector<16x128xf32>, vector<128x128xf32>, vector<16x128xf32> -> vector<16x128xf32>
    %7 = arith.addf %4, %6 : vector<16x128xf32>
    %c0_6 = arith.constant 0 : index
    %c0_7 = arith.constant 0 : index
    %8 = vector.load %arg9[%c0_6, %c0_7] : memref<16x128xf32, #tpu.memory_space<vmem>>, vector<16x128xf32>
    tpu.vector_store %arg9[%c0_6, %c0_7], %7 {strides = array<i32>} : memref<16x128xf32, #tpu.memory_space<vmem>>, vector<16x128xf32>,
    %c0_8 = arith.constant 0 : index
    %c0_9 = arith.constant 0 : index
    %9 = vector.load %arg10[%c0_8, %c0_9] : memref<16x128xf32, #tpu.memory_space<vmem>>, vector<16x128xf32>
    %c0_10 = arith.constant 0 : index
    %c0_11 = arith.constant 0 : index
    %10 = vector.load %arg5[%c0_10, %c0_11] : memref<128x128xf32, #tpu.memory_space<vmem>>, vector<128x128xf32>
    %cst_12 = arith.constant dense<0.000000e+00> : vector<16x128xf32>
    %11 = tpu.matmul %3, %10, %cst_12 {dimension_numbers = #tpu.dot_dimension_numbers<[1], [1], [0], [0], [0, 0, 1, 0], [], []>} : vector<16x128xf32>, vector<128x128xf32>, vector<16x128xf32> -> vector<16x128xf32>
    %12 = arith.addf %9, %11 : vector<16x128xf32>
    %c0_13 = arith.constant 0 : index
    %c0_14 = arith.constant 0 : index
    %13 = vector.load %arg10[%c0_13, %c0_14] : memref<16x128xf32, #tpu.memory_space<vmem>>, vector<16x128xf32>
    tpu.vector_store %arg10[%c0_13, %c0_14], %12 {strides = array<i32>} : memref<16x128xf32, #tpu.memory_space<vmem>>, vector<16x128xf32>,
    %c0_i32_15 = arith.constant 0 : i32
    %14 = arith.cmpi eq, %arg2, %c0_i32_15 : i32
    %15 = arith.extui %14 : i1 to i32
    %c0_i32_16 = arith.constant 0 : i32
    %16 = arith.cmpi ne, %15, %c0_i32_16 : i32
    scf.if %16 {
      %c0_17 = arith.constant 0 : index
      %c0_18 = arith.constant 0 : index
      %17 = vector.load %arg10[%c0_17, %c0_18] : memref<16x128xf32, #tpu.memory_space<vmem>>, vector<16x128xf32>
      %c0_19 = arith.constant 0 : index
      %c0_20 = arith.constant 0 : index
      %18 = vector.load %arg6[%c0_19, %c0_20] : memref<128x128xf32, #tpu.memory_space<vmem>>, vector<128x128xf32>
      %cst_21 = arith.constant dense<0.000000e+00> : vector<16x128xf32>
      %19 = tpu.matmul %17, %18, %cst_21 {dimension_numbers = #tpu.dot_dimension_numbers<[1], [1], [0], [0], [0, 0, 1, 0], [], []>} : vector<16x128xf32>, vector<128x128xf32>, vector<16x128xf32> -> vector<16x128xf32>
      %c0_22 = arith.constant 0 : index
      %c0_23 = arith.constant 0 : index
      %20 = vector.load %arg9[%c0_22, %c0_23] : memref<16x128xf32, #tpu.memory_space<vmem>>, vector<16x128xf32>
      %21 = arith.addf %20, %19 : vector<16x128xf32>
      %c0_24 = arith.constant 0 : index
      %c0_25 = arith.constant 0 : index
      %22 = vector.load %arg8[%c0_24, %c0_25] : memref<16x128xf32, #tpu.memory_space<vmem>>, vector<16x128xf32>
      tpu.vector_store %arg8[%c0_24, %c0_25], %21 {strides = array<i32>} : memref<16x128xf32, #tpu.memory_space<vmem>>, vector<16x128xf32>,
    } else {
    }
    return
  }
  func.func @transform_0(%arg0: i32, %arg1: i32, %arg2: i32) -> (i32, i32) {
    %c0_i32 = arith.constant 0 : i32
    return %arg0, %arg2 : i32, i32
  }
  func.func @transform_1(%arg0: i32, %arg1: i32, %arg2: i32) -> (i32, i32) {
    %c0_i32 = arith.constant 0 : i32
    return %arg1, %arg2 : i32, i32
  }
  func.func @transform_2(%arg0: i32, %arg1: i32, %arg2: i32) -> (i32, i32) {
    %c0_i32 = arith.constant 0 : i32
    %c0_i32_0 = arith.constant 0 : i32
    return %c0_i32, %arg2 : i32, i32
  }
  func.func @transform_3(%arg0: i32, %arg1: i32, %arg2: i32) -> (i32, i32) {
    %c0_i32 = arith.constant 0 : i32
    %c0_i32_0 = arith.constant 0 : i32
    return %arg1, %c0_i32 : i32, i32
  }
  func.func @transform_4(%arg0: i32, %arg1: i32, %arg2: i32) -> (i32, i32) {
    %c0_i32 = arith.constant 0 : i32
    %c0_i32_0 = arith.constant 0 : i32
    return %c0_i32, %arg1 : i32, i32
  }
  func.func @transform_5(%arg0: i32, %arg1: i32, %arg2: i32) -> (i32, i32) {
    %c0_i32 = arith.constant 0 : i32
    return %arg0, %arg1 : i32, i32
  }
}

</mosaic_0001>

<llo_original>
// kernel: tpu_custom_call.1
$region0: #{tpu_custom_call.1}
  #allocation0 [shape = 'u32[]', space=smem, size = 0x4, offset = 0x4, fixed_abs, tag = 'smem constant byte address 0x4 - core index']
  #allocation1 [shape = 'u32[72,128]{1,0:T(1,128)}', space=vmem, size = 0x9000, scoped, tag = 'internal scratch']
  #allocation2 [shape = 'f32[16,128]{1,0:T(8,128)}', space=vmem, size = 0x2000, scoped, tag = 'scratch operand']
  #allocation3 [shape = 'f32[16,128]{1,0:T(8,128)}', space=vmem, size = 0x2000, scoped, tag = 'scratch operand']
  %s0 = inlined_call_operand.hbm [shape: f32[16,128], index: 0, kind: input, shape index: {}]
  %s1 = inlined_call_operand.hbm [shape: f32[128,128], index: 1, kind: input, shape index: {}]
  %s2 = inlined_call_operand.hbm [shape: f32[128,128], index: 2, kind: input, shape index: {}]
  %s3 = inlined_call_operand.hbm [shape: f32[128,128], index: 3, kind: input, shape index: {}]
  %s4 = inlined_call_operand.vmem [shape: f32[1,128], index: 4, kind: input, shape index: {}]
  %s5 = inlined_call_operand.hbm [shape: f32[16,128], index: 5, kind: output, shape index: {}]
  %s6 = sld [smem:[#allocation0]]
  $region54: #{tpu_custom_call.1} parent=0
    _
  %s8 = ssub.s32 1, %s6
  %s9 = scalar_select 0, %s8, %s6
  $region1: #{tpu_custom_call.1} parent=0
    #allocation4 [shape = 'u8[8192]{0}', space=vmem, size = 0x2000, scoped, tag = 'input window, operand 0, single buffered']
    #allocation5 [shape = 's32[1]{0}', space=sflag, size = 0x4, scoped, tag = 'scoped memory for tpu_custom_call.1']
    #allocation6 [shape = 's32[1]{0}', space=sflag, size = 0x4, scoped, tag = 'scoped memory for tpu_custom_call.1']
    #allocation7 [shape = 'u8[65536]{0}', space=vmem, size = 0x10000, scoped, tag = 'input window, operand 1, single buffered']
    #allocation8 [shape = 's32[1]{0}', space=sflag, size = 0x4, scoped, tag = 'scoped memory for tpu_custom_call.1']
    #allocation9 [shape = 'u8[65536]{0}', space=vmem, size = 0x10000, scoped, tag = 'input window, operand 2, single buffered']
    #allocation10 [shape = 'u8[65536]{0}', space=vmem, size = 0x10000, scoped, tag = 'input window, operand 3, single buffered']
    #allocation11 [shape = 's32[1]{0}', space=sflag, size = 0x4, scoped, tag = 'scoped memory for tpu_custom_call.1']
    #allocation12 [shape = 'u8[8192]{0}', space=vmem, size = 0x2000, scoped, tag = 'output window, operand 0, single buffered']
    %10 = vsyncpa [#allocation5], 0
    %11 = vsyncpa [#allocation8], 0
    %12 = vsyncpa [#allocation11], 0
    %13 = vsyncpa [#allocation6], 0
    // Predicated region
    $region2: #{tpu_custom_call.1} parent=1 // pred_check
      _
    $region3: #{tpu_custom_call.1} parent=1 // pred_check_branch
      %15 = sbr.rel (0) target = $region5
    $region4: #{tpu_custom_call.1} parent=1 // pred_region
      %17 = vsyncadd [#allocation5], 0
      %s18 = sshll.u32 %s0, 4
      %s19 = int_to_ptr.hbm [resolvable:$true] %s18
      %s20 = sshll.u32 [#allocation4], 4
      %s21 = int_to_ptr.vmem [resolvable:$true] %s20
      %26 = dma.hbm_to_vmem [thread:$0]  %s19, 256, %s21, [#allocation5], 128, 128, 8
    $region5: #{tpu_custom_call.1} parent=1 // pred_fallthru
      _
    // Predicated region
    $region6: #{tpu_custom_call.1} parent=1 // pred_check
      _
    $region7: #{tpu_custom_call.1} parent=1 // pred_check_branch
      %28 = sbr.rel (0) target = $region9
    $region8: #{tpu_custom_call.1} parent=1 // pred_region
      %30 = vsyncadd [#allocation8], 0
      %s31 = sshll.u32 %s1, 4
      %s32 = int_to_ptr.hbm [resolvable:$true] %s31
      %s33 = sshll.u32 [#allocation7], 4
      %s34 = int_to_ptr.vmem [resolvable:$true] %s33
      %39 = dma.hbm_to_vmem [thread:$0]  %s32, 2048, %s34, [#allocation8], 128, 128, 8
    $region9: #{tpu_custom_call.1} parent=1 // pred_fallthru
      _
    // Predicated region
    $region10: #{tpu_custom_call.1} parent=1 // pred_check
      _
    $region11: #{tpu_custom_call.1} parent=1 // pred_check_branch
      %41 = sbr.rel (0) target = $region13
    $region12: #{tpu_custom_call.1} parent=1 // pred_region
      %43 = vsyncadd [#allocation8], 0
      %s44 = sshll.u32 %s2, 4
      %s45 = int_to_ptr.hbm [resolvable:$true] %s44
      %s46 = sshll.u32 [#allocation9], 4
      %s47 = int_to_ptr.vmem [resolvable:$true] %s46
      %52 = dma.hbm_to_vmem [thread:$0]  %s45, 2048, %s47, [#allocation8], 128, 128, 8
    $region13: #{tpu_custom_call.1} parent=1 // pred_fallthru
      _
    // Predicated region
    $region14: #{tpu_custom_call.1} parent=1 // pred_check
      _
    $region15: #{tpu_custom_call.1} parent=1 // pred_check_branch
      %54 = sbr.rel (0) target = $region17
    $region16: #{tpu_custom_call.1} parent=1 // pred_region
      %56 = vsyncadd [#allocation11], 0
      %s57 = sshll.u32 %s3, 4
      %s58 = int_to_ptr.hbm [resolvable:$true] %s57
      %s59 = sshll.u32 [#allocation10], 4
      %s60 = int_to_ptr.vmem [resolvable:$true] %s59
      %65 = dma.hbm_to_vmem [thread:$0]  %s58, 2048, %s60, [#allocation11], 128, 128, 8
    $region17: #{tpu_custom_call.1} parent=1 // pred_fallthru
      _
    // Predicated region
    $region18: #{tpu_custom_call.1} parent=1 // pred_check
      _
    $region19: #{tpu_custom_call.1} parent=1 // pred_check_branch
      %67 = sbr.rel (0) target = $region21
    $region20: #{tpu_custom_call.1} parent=1 // pred_region
      _
    $region21: #{tpu_custom_call.1} parent=1 // pred_fallthru
      _
    // Predicated region
    $region22: #{tpu_custom_call.1} parent=1 // pred_check
      _
    $region23: #{tpu_custom_call.1} parent=1 // pred_check_branch
      %69 = sbr.rel (0) target = $region25
    $region24: #{tpu_custom_call.1} parent=1 // pred_region
      %71 = dma.done [#allocation5], 256
    $region25: #{tpu_custom_call.1} parent=1 // pred_fallthru
      _
    // Predicated region
    $region26: #{tpu_custom_call.1} parent=1 // pred_check
      _
    $region27: #{tpu_custom_call.1} parent=1 // pred_check_branch
      %73 = sbr.rel (0) target = $region29
    $region28: #{tpu_custom_call.1} parent=1 // pred_region
      %75 = dma.done [#allocation8], 2048
    $region29: #{tpu_custom_call.1} parent=1 // pred_fallthru
      _
    // Predicated region
    $region30: #{tpu_custom_call.1} parent=1 // pred_check
      _
    $region31: #{tpu_custom_call.1} parent=1 // pred_check_branch
      %77 = sbr.rel (0) target = $region33
    $region32: #{tpu_custom_call.1} parent=1 // pred_region
      %79 = dma.done [#allocation8], 2048
    $region33: #{tpu_custom_call.1} parent=1 // pred_fallthru
      _
    // Predicated region
    $region34: #{tpu_custom_call.1} parent=1 // pred_check
      _
    $region35: #{tpu_custom_call.1} parent=1 // pred_check_branch
      %81 = sbr.rel (0) target = $region37
    $region36: #{tpu_custom_call.1} parent=1 // pred_region
      %83 = dma.done [#allocation11], 2048
    $region37: #{tpu_custom_call.1} parent=1 // pred_fallthru
      _
    %p84 = scmp.eq.s32.totalorder 0, 0
    // Predicated region
    $region38: #{tpu_custom_call.1} parent=1 // pred_check
      %p85 = pneg %p84
    $region39: #{tpu_custom_call.1} parent=1 // pred_check_branch
      %87 = sbr.rel (%p85) target = $region41
    $region40: #{tpu_custom_call.1} parent=1 // pred_region
      %v88 = vld [vmem:[%s4] sm:$0x1]
      %v90 = vperm.slane %v88, 0
      %92 = vst [vmem:[#allocation2] sm:$0xff] %v90
      %93 = vst [vmem:[#allocation2 + $0x8] sm:$0xff] %v90
      %94 = vst [vmem:[#allocation3] sm:$0xff] 0.0
      %95 = vst [vmem:[#allocation3 + $0x8] sm:$0xff] 0.0
    $region41: #{tpu_custom_call.1} parent=1 // pred_fallthru
      _
    %v96 = vld [vmem:[#allocation4] sm:$0xff]
    %v97 = vld [vmem:[#allocation4 + $0x8] sm:$0xff]
    %v98 = vld [vmem:[#allocation2] sm:$0xff]
    %v99 = vld [vmem:[#allocation2 + $0x8] sm:$0xff]
    %v100 = vld [vmem:[#allocation7] sm:$0xff]
    %v101 = vld [vmem:[#allocation7 + $0x8] sm:$0xff]
    %v102 = vld [vmem:[#allocation7 + $0x10] sm:$0xff]
    %v103 = vld [vmem:[#allocation7 + $0x18] sm:$0xff]
    %v104 = vld [vmem:[#allocation7 + $0x20] sm:$0xff]
    %v105 = vld [vmem:[#allocation7 + $0x28] sm:$0xff]
    %v106 = vld [vmem:[#allocation7 + $0x30] sm:$0xff]
    %v107 = vld [vmem:[#allocation7 + $0x38] sm:$0xff]
    %v108 = vld [vmem:[#allocation7 + $0x40] sm:$0xff]
    %v109 = vld [vmem:[#allocation7 + $0x48] sm:$0xff]
    %v110 = vld [vmem:[#allocation7 + $0x50] sm:$0xff]
    %v111 = vld [vmem:[#allocation7 + $0x58] sm:$0xff]
    %v112 = vld [vmem:[#allocation7 + $0x60] sm:$0xff]
    %v113 = vld [vmem:[#allocation7 + $0x68] sm:$0xff]
    %v114 = vld [vmem:[#allocation7 + $0x70] sm:$0xff]
    %v115 = vld [vmem:[#allocation7 + $0x78] sm:$0xff]
    %116 = vmatpush.xpose.msra.mxu0 %v115
    %117 = vmatpush.xpose.msra.mxu0 %v114
    %118 = vmatpush.xpose.msra.mxu0 %v113
    %119 = vmatpush.xpose.msra.mxu0 %v112
    %120 = vmatpush.xpose.msra.mxu0 %v111
    %121 = vmatpush.xpose.msra.mxu0 %v110
    %122 = vmatpush.xpose.msra.mxu0 %v109
    %123 = vmatpush.xpose.msra.mxu0 %v108
    %124 = vmatpush.xpose.msra.mxu0 %v107
    %125 = vmatpush.xpose.msra.mxu0 %v106
    %126 = vmatpush.xpose.msra.mxu0 %v105
    %127 = vmatpush.xpose.msra.mxu0 %v104
    %128 = vmatpush.xpose.msra.mxu0 %v103
    %129 = vmatpush.xpose.msra.mxu0 %v102
    %130 = vmatpush.xpose.msra.mxu0 %v101
    %131 = vmatpush.xpose.msra.mxu0 %v100
    %132 = vmatmul.f32.gmra.mxu0 %v96
    %v133 = vpop.f32.mrf.mxu0
    %v134 = vadd.f32 0.0, %v133
    %135 = vmatmul.f32.gmra.mxu0 %v97
    %v136 = vpop.f32.mrf.mxu0
    %v137 = vadd.f32 0.0, %v136
    %138 = vdwg.mxu0
    %v139 = vadd.f32 %v98, %v134
    %v140 = vadd.f32 %v99, %v137
    %141 = vst [vmem:[#allocation2] sm:$0xff] %v139
    %142 = vst [vmem:[#allocation2 + $0x8] sm:$0xff] %v140
    %v143 = vld [vmem:[#allocation3] sm:$0xff]
    %v144 = vld [vmem:[#allocation3 + $0x8] sm:$0xff]
    %v145 = vld [vmem:[#allocation9] sm:$0xff]
    %v146 = vld [vmem:[#allocation9 + $0x8] sm:$0xff]
    %v147 = vld [vmem:[#allocation9 + $0x10] sm:$0xff]
    %v148 = vld [vmem:[#allocation9 + $0x18] sm:$0xff]
    %v149 = vld [vmem:[#allocation9 + $0x20] sm:$0xff]
    %v150 = vld [vmem:[#allocation9 + $0x28] sm:$0xff]
    %v151 = vld [vmem:[#allocation9 + $0x30] sm:$0xff]
    %v152 = vld [vmem:[#allocation9 + $0x38] sm:$0xff]
    %v153 = vld [vmem:[#allocation9 + $0x40] sm:$0xff]
    %v154 = vld [vmem:[#allocation9 + $0x48] sm:$0xff]
    %v155 = vld [vmem:[#allocation9 + $0x50] sm:$0xff]
    %v156 = vld [vmem:[#allocation9 + $0x58] sm:$0xff]
    %v157 = vld [vmem:[#allocation9 + $0x60] sm:$0xff]
    %v158 = vld [vmem:[#allocation9 + $0x68] sm:$0xff]
    %v159 = vld [vmem:[#allocation9 + $0x70] sm:$0xff]
    %v160 = vld [vmem:[#allocation9 + $0x78] sm:$0xff]
    %161 = vmatpush.xpose.msra.mxu0 %v160
    %162 = vmatpush.xpose.msra.mxu0 %v159
    %163 = vmatpush.xpose.msra.mxu0 %v158
    %164 = vmatpush.xpose.msra.mxu0 %v157
    %165 = vmatpush.xpose.msra.mxu0 %v156
    %166 = vmatpush.xpose.msra.mxu0 %v155
    %167 = vmatpush.xpose.msra.mxu0 %v154
    %168 = vmatpush.xpose.msra.mxu0 %v153
    %169 = vmatpush.xpose.msra.mxu0 %v152
    %170 = vmatpush.xpose.msra.mxu0 %v151
    %171 = vmatpush.xpose.msra.mxu0 %v150
    %172 = vmatpush.xpose.msra.mxu0 %v149
    %173 = vmatpush.xpose.msra.mxu0 %v148
    %174 = vmatpush.xpose.msra.mxu0 %v147
    %175 = vmatpush.xpose.msra.mxu0 %v146
    %176 = vmatpush.xpose.msra.mxu0 %v145
    %177 = vmatmul.f32.gmra.mxu0 %v96
    %v178 = vpop.f32.mrf.mxu0
    %v179 = vadd.f32 0.0, %v178
    %180 = vmatmul.f32.gmra.mxu0 %v97
    %v181 = vpop.f32.mrf.mxu0
    %v182 = vadd.f32 0.0, %v181
    %183 = vdwg.mxu0
    %v184 = vadd.f32 %v143, %v179
    %v185 = vadd.f32 %v144, %v182
    %186 = vst [vmem:[#allocation3] sm:$0xff] %v184
    %187 = vst [vmem:[#allocation3 + $0x8] sm:$0xff] %v185
    // Predicated region
    $region42: #{tpu_custom_call.1} parent=1 // pred_check
      %p188 = pneg %p84
    $region43: #{tpu_custom_call.1} parent=1 // pred_check_branch
      %190 = sbr.rel (%p188) target = $region45
    $region44: #{tpu_custom_call.1} parent=1 // pred_region
      %v191 = vld [vmem:[#allocation3] sm:$0xff]
      %v192 = vld [vmem:[#allocation3 + $0x8] sm:$0xff]
      %v193 = vld [vmem:[#allocation10] sm:$0xff]
      %v194 = vld [vmem:[#allocation10 + $0x8] sm:$0xff]
      %v195 = vld [vmem:[#allocation10 + $0x10] sm:$0xff]
      %v196 = vld [vmem:[#allocation10 + $0x18] sm:$0xff]
      %v197 = vld [vmem:[#allocation10 + $0x20] sm:$0xff]
      %v198 = vld [vmem:[#allocation10 + $0x28] sm:$0xff]
      %v199 = vld [vmem:[#allocation10 + $0x30] sm:$0xff]
      %v200 = vld [vmem:[#allocation10 + $0x38] sm:$0xff]
      %v201 = vld [vmem:[#allocation10 + $0x40] sm:$0xff]
      %v202 = vld [vmem:[#allocation10 + $0x48] sm:$0xff]
      %v203 = vld [vmem:[#allocation10 + $0x50] sm:$0xff]
      %v204 = vld [vmem:[#allocation10 + $0x58] sm:$0xff]
      %v205 = vld [vmem:[#allocation10 + $0x60] sm:$0xff]
      %v206 = vld [vmem:[#allocation10 + $0x68] sm:$0xff]
      %v207 = vld [vmem:[#allocation10 + $0x70] sm:$0xff]
      %v208 = vld [vmem:[#allocation10 + $0x78] sm:$0xff]
      %209 = vmatpush.xpose.msra.mxu0 %v208
      %210 = vmatpush.xpose.msra.mxu0 %v207
      %211 = vmatpush.xpose.msra.mxu0 %v206
      %212 = vmatpush.xpose.msra.mxu0 %v205
      %213 = vmatpush.xpose.msra.mxu0 %v204
      %214 = vmatpush.xpose.msra.mxu0 %v203
      %215 = vmatpush.xpose.msra.mxu0 %v202
      %216 = vmatpush.xpose.msra.mxu0 %v201
      %217 = vmatpush.xpose.msra.mxu0 %v200
      %218 = vmatpush.xpose.msra.mxu0 %v199
      %219 = vmatpush.xpose.msra.mxu0 %v198
      %220 = vmatpush.xpose.msra.mxu0 %v197
      %221 = vmatpush.xpose.msra.mxu0 %v196
      %222 = vmatpush.xpose.msra.mxu0 %v195
      %223 = vmatpush.xpose.msra.mxu0 %v194
      %224 = vmatpush.xpose.msra.mxu0 %v193
      %225 = vmatmul.f32.gmra.mxu0 %v191
      %v226 = vpop.f32.mrf.mxu0
      %v227 = vadd.f32 0.0, %v226
      %228 = vmatmul.f32.gmra.mxu0 %v192
      %v229 = vpop.f32.mrf.mxu0
      %v230 = vadd.f32 0.0, %v229
      %231 = vdwg.mxu0
      %v232 = vld [vmem:[#allocation2] sm:$0xff]
      %v233 = vld [vmem:[#allocation2 + $0x8] sm:$0xff]
      %v234 = vadd.f32 %v232, %v227
      %v235 = vadd.f32 %v233, %v230
      %236 = vst [vmem:[#allocation12] sm:$0xff] %v234
      %237 = vst [vmem:[#allocation12 + $0x8] sm:$0xff] %v235
    $region45: #{tpu_custom_call.1} parent=1 // pred_fallthru
      _
    // Predicated region
    $region46: #{tpu_custom_call.1} parent=1 // pred_check
      _
    $region47: #{tpu_custom_call.1} parent=1 // pred_check_branch
      %239 = sbr.rel (0) target = $region49
    $region48: #{tpu_custom_call.1} parent=1 // pred_region
      %241 = vsyncadd [#allocation6], 0
      %s242 = sshll.u32 [#allocation12], 4
      %s243 = int_to_ptr.vmem [resolvable:$true] %s242
      %s244 = sshll.u32 %s5, 4
      %s245 = int_to_ptr.hbm [resolvable:$true] %s244
      %250 = dma.vmem_to_hbm [thread:$0]  %s243, 256, %s245, [#allocation6], 128, 128, 8
    $region49: #{tpu_custom_call.1} parent=1 // pred_fallthru
      _
    // Predicated region
    $region50: #{tpu_custom_call.1} parent=1 // pred_check
      _
    $region51: #{tpu_custom_call.1} parent=1 // pred_check_branch
      %252 = sbr.rel (0) target = $region53
    $region52: #{tpu_custom_call.1} parent=1 // pred_region
      %254 = dma.done [#allocation6], 256
    $region53: #{tpu_custom_call.1} parent=1 // pred_fallthru
      _
    %255 = vsyncpa [#allocation5], 1
    %256 = vsyncpa [#allocation8], 1
    %257 = vsyncpa [#allocation11], 1
    %258 = vsyncpa [#allocation6], 1

</llo_original>
